<compile_context>
chip_gen: v6e
topology: v6e:2x2x1
jax: 0.10.0
libtpu: 0.0.40
codegen_flags: <defaults>
</compile_context>

<pallas_src>
import jax
import jax.numpy as jnp
from jax.experimental import pallas as pl
from jax.experimental.pallas import tpu as pltpu


def _round_up(x, m):
    return ((x + m - 1) // m) * m


def _tpu_generation():
    """Best-effort TPU generation (5, 6, 7) or None (unknown / interpret on CPU)."""
    try:
        kind = jax.devices()[0].device_kind.lower()
    except Exception:
        return None
    if "tpu" not in kind:
        return None
    if "v7" in kind or "tpu7" in kind:
        return 7
    if "v6" in kind:
        return 6
    if "v5" in kind:
        return 5
    return None


def _pick_batch_tile(B, gen):
    # Only split the batch on v7x (two TensorCores per chip).  v5e/v6e have a
    # single TC: tB = B keeps each enc tile fully contiguous in HBM (enc is
    # (S, B, H) row-major) and halves the number of grid steps.
    if gen == 7 and B >= 16 and B % 16 == 0:
        return B // 2
    # TODO(synk): for tiny-B / long-S workloads on v7x a 2-way S split with a
    # cross-core (m, l, acc) combine would be needed to keep both TCs busy.
    return B


def _pick_seq_tile(S, tB, H, enc_itemsize, gen, seq_tile=None):
    """Sequence tile: must divide S; sized so the enc tile is a few MiB."""
    if seq_tile is not None:
        ts = max(1, min(int(seq_tile), S))
        if S % ts == 0:
            return ts
    # Per-step enc-tile byte target (per TensorCore): comfortably above
    # step-overhead x HBM bandwidth so the DMA pipeline tracks the roofline.
    budget = {5: 3 << 20, 6: 4 << 20, 7: 4 << 20}.get(gen, 2 << 20)
    row_bytes = max(1, tB * H * enc_itemsize)
    ts = min(S, max(8, budget // row_bytes))
    if ts >= S:
        return S
    # Prefer a divisor of S that is a multiple of 128 (lane-dense numerator
    # scratch tiles), else a multiple of 8.
    for quantum in (128, 8):
        t = (ts // quantum) * quantum
        while t >= quantum:
            if S % t == 0:
                return t
            t -= quantum
    # TODO(synk): S with no multiple-of-8 divisor falls back to a single tile;
    # a masked ragged tail would be needed for very long prime-ish S.
    return S


def _vmem_limit_bytes(S, H, tB, tS, ns, enc_item, hid_item, out_item, cd_item, gen):
    sub = lambda n: _round_up(max(int(n), 1), 8)
    lane = lambda n: _round_up(max(int(n), 1), 128)
    pipelined = (
        2 * tS * sub(tB) * lane(H) * enc_item      # enc tile, double buffered
        + 2 * sub(tB) * lane(H) * hid_item         # hidden block
        + 2 * sub(tB) * lane(S) * out_item         # resident weights block
        + 2 * sub(tB) * lane(H) * out_item         # resident context block
    )
    scratch = (
        sub(tB) * lane(H) * cd_item                # h_scr
        + 2 * sub(tB) * 128 * 4                    # m_scr, l_scr
        + sub(tB) * lane(H) * 4                    # acc_scr
        + ns * sub(tB) * lane(tS) * 4              # softmax-numerator scratch
        + ns * sub(tB) * 128 * 4                   # per-tile running max
    )
    total = int((pipelined + scratch) * 1.25) + (2 << 20)
    cap = (56 << 20) if gen == 7 else (100 << 20) if gen in (5, 6) else (48 << 20)
    return max(8 << 20, min(total, cap))


def attention_forward(hidden, encoder_outputs, *, seq_tile=None, enc_buffers=None):
    """hidden: (B, H); encoder_outputs: (S, B, H) (PyTorch seq-first layout).

    Returns (attn_weights (B, S), context (B, H)).
    """
    S, B, H = encoder_outputs.shape
    assert hidden.shape == (B, H), (hidden.shape, (B, H))

    gen = _tpu_generation()
    tB = _pick_batch_tile(B, gen)
    enc_item = jnp.dtype(encoder_outputs.dtype).itemsize
    hid_item = jnp.dtype(hidden.dtype).itemsize
    tS = _pick_seq_tile(S, tB, H, enc_item, gen, seq_tile)
    nb, ns = B // tB, S // tS

    out_dtype = jnp.result_type(hidden.dtype, encoder_outputs.dtype)
    # bf16 products on chips with a bf16 VALU (v6e/v7x); f32 everywhere else.
    if encoder_outputs.dtype == jnp.bfloat16 and gen in (6, 7):
        compute_dtype = jnp.bfloat16
    else:
        compute_dtype = jnp.float32
    out_item = jnp.dtype(out_dtype).itemsize
    cd_item = jnp.dtype(compute_dtype).itemsize

    def kernel(hidden_ref, enc_ref, w_ref, ctx_ref,
               h_scr, m_scr, l_scr, acc_scr, pnum_scr, mstep_scr):
        # hidden_ref (tB, H)    enc_ref (tS, tB, H)
        # w_ref (tB, S)         ctx_ref (tB, H)
        # h_scr (tB, H) cdt     m_scr/l_scr (tB, 1) f32    acc_scr (tB, H) f32
        # pnum_scr (ns, tB, tS) f32    mstep_scr (ns, tB, 1) f32
        s_idx = pl.program_id(1)

        @pl.when(s_idx == 0)
        def _init():
            # Hoisted per-batch-block work: cast hidden once, reset the
            # online-softmax state.
            h_scr[...] = hidden_ref[...].astype(compute_dtype)
            m_scr[...] = jnp.full((tB, 1), -jnp.inf, dtype=jnp.float32)
            l_scr[...] = jnp.zeros((tB, 1), dtype=jnp.float32)
            acc_scr[...] = jnp.zeros((tB, H), dtype=jnp.float32)

        enc = enc_ref[...]
        if enc.dtype != compute_dtype:
            enc = enc.astype(compute_dtype)   # f32 upcast only on v5e / unknown

        # Luong dot score: scores[b, s] = <enc[s, b, :], hidden[b, :]>
        # (per-batch mat-vec: VPU multiply in compute_dtype + f32 lane reduce,
        # then a small (tS, tB) -> (tB, tS) transpose so the softmax is
        # lane-dense with the sequence axis on lanes).
        prod = enc * h_scr[...][None, :, :]                        # (tS, tB, H)
        scores = jnp.sum(prod, axis=-1, dtype=jnp.float32).T       # (tB, tS)

        # Online softmax over the sequence axis.
        m_prev = m_scr[...]                                        # (tB, 1)
        m_new = jnp.maximum(m_prev, jnp.max(scores, axis=-1, keepdims=True))
        alpha = jnp.exp(m_prev - m_new)                            # (tB, 1)
        p = jnp.exp(scores - m_new)                                # (tB, tS)
        l_scr[...] = alpha * l_scr[...] + jnp.sum(p, axis=-1, keepdims=True)

        # Stash the unnormalized numerators + this step's max; the final
        # normalization needs the global (m, l).
        pnum_scr[s_idx] = p
        mstep_scr[s_idx] = m_new

        # Context contribution: sum_s p[b, s] * enc[s, b, :].
        p_sb = p.T                                                 # (tS, tB)
        if compute_dtype != jnp.float32:
            p_sb = p_sb.astype(compute_dtype)
        contrib = jnp.sum(p_sb[:, :, None] * enc, axis=0, dtype=jnp.float32)
        acc_scr[...] = alpha * acc_scr[...] + contrib              # (tB, H)
        m_scr[...] = m_new

        @pl.when(s_idx == ns - 1)
        def _finalize():
            inv_l = 1.0 / l_scr[...]                               # exact divide
            m_fin = m_scr[...]
            # Statically unrolled rescale of the stashed tiles: no transpose,
            # no second full-S exp, static lane slices into the resident block.
            for j in range(ns):
                scale = jnp.exp(mstep_scr[j] - m_fin) * inv_l      # (tB, 1)
                w_ref[:, j * tS:(j + 1) * tS] = (
                    pnum_scr[j] * scale).astype(w_ref.dtype)
            ctx_ref[...] = (acc_scr[...] * inv_l).astype(ctx_ref.dtype)

    enc_spec_kwargs = {}
    if enc_buffers is not None:
        # Optional deeper pipelining for strided enc tiles (tB < B on v7x);
        # sweep 2 vs 3 with a profile before enabling.
        enc_spec_kwargs["pipeline_mode"] = pl.Buffered(int(enc_buffers))

    grid_spec = pltpu.PrefetchScalarGridSpec(
        num_scalar_prefetch=0,
        grid=(nb, ns),
        in_specs=[
            pl.BlockSpec((tB, H), lambda b, s: (b, 0)),               # hidden
            pl.BlockSpec((tS, tB, H), lambda b, s: (s, b, 0),         # encoder outputs
                         **enc_spec_kwargs),
        ],
        out_specs=[
            pl.BlockSpec((tB, S), lambda b, s: (b, 0)),               # weights (B, S)
            pl.BlockSpec((tB, H), lambda b, s: (b, 0)),               # context (B, H)
        ],
        scratch_shapes=[
            pltpu.VMEM((tB, H), compute_dtype),      # hidden, cast once per block
            pltpu.VMEM((tB, 1), jnp.float32),        # running max m
            pltpu.VMEM((tB, 1), jnp.float32),        # running sum l
            pltpu.VMEM((tB, H), jnp.float32),        # context accumulator
            pltpu.VMEM((ns, tB, tS), jnp.float32),   # unnormalized softmax numerators
            pltpu.VMEM((ns, tB, 1), jnp.float32),    # per-tile running max
        ],
    )

    weights, context = pl.pallas_call(
        kernel,
        out_shape=(
            jax.ShapeDtypeStruct((B, S), out_dtype),
            jax.ShapeDtypeStruct((B, H), out_dtype),
        ),
        grid_spec=grid_spec,
        compiler_params=pltpu.CompilerParams(
            dimension_semantics=("parallel", "arbitrary"),
            vmem_limit_bytes=_vmem_limit_bytes(
                S, H, tB, tS, ns, enc_item, hid_item, out_item, cd_item, gen),
        ),
    )(hidden, encoder_outputs)
    return weights, context


def _reference(hidden, encoder_outputs):
    # Pure-JAX mirror of the PyTorch attn_weights + attn_context path.
    scores = jnp.einsum('bh,sbh->bs', hidden, encoder_outputs)
    w = jax.nn.softmax(scores, axis=1)
    ctx = jnp.einsum('bs,sbh->bh', w, encoder_outputs)
    return w, ctx


if __name__ == "__main__":
    key = jax.random.PRNGKey(0)
    S, B, H = 16, 16, 32
    k1, k2 = jax.random.split(key)
    hidden = jax.random.normal(k1, (B, H), dtype=jnp.float32)
    encoder_outputs = jax.random.normal(k2, (S, B, H), dtype=jnp.float32)

    # seq_tile=8 -> two sequence tiles per batch block so the online-softmax /
    # numerator-rescale path is exercised.
    weights, context = attention_forward(hidden, encoder_outputs, seq_tile=8)
    jax.block_until_ready((weights, context))

    ref_w, ref_c = _reference(hidden, encoder_outputs)
    assert weights.shape == (B, S) and context.shape == (B, H)
    assert jnp.allclose(weights, ref_w, atol=1e-4, rtol=1e-4), \
        float(jnp.max(jnp.abs(weights - ref_w)))
    assert jnp.allclose(context, ref_c, atol=1e-4, rtol=1e-4), \
        float(jnp.max(jnp.abs(context - ref_c)))
    print("KERNEL_OK")
</pallas_src>

<mosaic_0001>
module attributes {stable_mosaic.version = 11 : i64} {
  func.func @kernel(%arg0: i32, %arg1: i32, %arg2: memref<16x32xf32, #tpu.memory_space<vmem>>, %arg3: memref<8x16x32xf32, #tpu.memory_space<vmem>>, %arg4: memref<16x16xf32, #tpu.memory_space<vmem>>, %arg5: memref<16x32xf32, #tpu.memory_space<vmem>>, %arg6: memref<16x32xf32, #tpu.memory_space<vmem>>, %arg7: memref<16x1xf32, #tpu.memory_space<vmem>>, %arg8: memref<16x1xf32, #tpu.memory_space<vmem>>, %arg9: memref<16x32xf32, #tpu.memory_space<vmem>>, %arg10: memref<2x16x8xf32, #tpu.memory_space<vmem>>, %arg11: memref<2x16x1xf32, #tpu.memory_space<vmem>>) attributes {dimension_semantics = [#tpu.dimension_semantics<parallel>, #tpu.dimension_semantics<arbitrary>], iteration_bounds = array<i64: 1, 2>, scalar_prefetch = 0 : i64, scratch_operands = 6 : i64, tpu.core_type = #tpu.core_type<tc>, window_params = [{transform_indices = @transform_0, window_bounds = array<i64: 16, 32>}, {transform_indices = @transform_1, window_bounds = array<i64: 8, 16, 32>}, {transform_indices = @transform_2, window_bounds = array<i64: 16, 16>}, {transform_indices = @transform_3, window_bounds = array<i64: 16, 32>}]} {
    %c0_i32 = arith.constant 0 : i32
    %0 = arith.cmpi eq, %arg1, %c0_i32 : i32
    %1 = arith.extui %0 : i1 to i32
    %c0_i32_0 = arith.constant 0 : i32
    %2 = arith.cmpi ne, %1, %c0_i32_0 : i32
    scf.if %2 {
      %c0_25 = arith.constant 0 : index
      %c0_26 = arith.constant 0 : index
      %47 = vector.load %arg2[%c0_25, %c0_26] : memref<16x32xf32, #tpu.memory_space<vmem>>, vector<16x32xf32>
      %c0_27 = arith.constant 0 : index
      %c0_28 = arith.constant 0 : index
      %48 = vector.load %arg6[%c0_27, %c0_28] : memref<16x32xf32, #tpu.memory_space<vmem>>, vector<16x32xf32>
      tpu.vector_store %arg6[%c0_27, %c0_28], %47 {strides = array<i32>} : memref<16x32xf32, #tpu.memory_space<vmem>>, vector<16x32xf32>,
      %cst_29 = arith.constant 0xFF800000 : f32
      %49 = vector.broadcast %cst_29 : f32 to vector<16x1xf32>
      %c0_30 = arith.constant 0 : index
      %c0_31 = arith.constant 0 : index
      %50 = vector.load %arg7[%c0_30, %c0_31] : memref<16x1xf32, #tpu.memory_space<vmem>>, vector<16x1xf32>
      tpu.vector_store %arg7[%c0_30, %c0_31], %49 {strides = array<i32>} : memref<16x1xf32, #tpu.memory_space<vmem>>, vector<16x1xf32>,
      %cst_32 = arith.constant 0.000000e+00 : f32
      %51 = vector.broadcast %cst_32 : f32 to vector<16x1xf32>
      %c0_33 = arith.constant 0 : index
      %c0_34 = arith.constant 0 : index
      %52 = vector.load %arg8[%c0_33, %c0_34] : memref<16x1xf32, #tpu.memory_space<vmem>>, vector<16x1xf32>
      tpu.vector_store %arg8[%c0_33, %c0_34], %51 {strides = array<i32>} : memref<16x1xf32, #tpu.memory_space<vmem>>, vector<16x1xf32>,
      %cst_35 = arith.constant 0.000000e+00 : f32
      %53 = vector.broadcast %cst_35 : f32 to vector<16x32xf32>
      %c0_36 = arith.constant 0 : index
      %c0_37 = arith.constant 0 : index
      %54 = vector.load %arg9[%c0_36, %c0_37] : memref<16x32xf32, #tpu.memory_space<vmem>>, vector<16x32xf32>
      tpu.vector_store %arg9[%c0_36, %c0_37], %53 {strides = array<i32>} : memref<16x32xf32, #tpu.memory_space<vmem>>, vector<16x32xf32>,
    } else {
    }
    %c0 = arith.constant 0 : index
    %c0_1 = arith.constant 0 : index
    %c0_2 = arith.constant 0 : index
    %3 = vector.load %arg3[%c0, %c0_1, %c0_2] : memref<8x16x32xf32, #tpu.memory_space<vmem>>, vector<8x16x32xf32>
    %c0_3 = arith.constant 0 : index
    %c0_4 = arith.constant 0 : index
    %4 = vector.load %arg6[%c0_3, %c0_4] : memref<16x32xf32, #tpu.memory_space<vmem>>, vector<16x32xf32>
    %5 = vector.shape_cast %4 : vector<16x32xf32> to vector<1x16x32xf32>
    %6 = vector.broadcast %5 : vector<1x16x32xf32> to vector<8x16x32xf32>
    %7 = arith.mulf %3, %6 : vector<8x16x32xf32>
    %cst = arith.constant dense<0.000000e+00> : vector<8x16xf32>
    %8 = vector.multi_reduction <add>, %7, %cst [2] : vector<8x16x32xf32> to vector<8x16xf32>
    %9 = tpu.transpose %8, [1, 0] : vector<8x16xf32> -> vector<16x8xf32>
    %c0_5 = arith.constant 0 : index
    %c0_6 = arith.constant 0 : index
    %10 = vector.load %arg7[%c0_5, %c0_6] : memref<16x1xf32, #tpu.memory_space<vmem>>, vector<16x1xf32>
    %cst_7 = arith.constant dense<0xFF800000> : vector<16xf32>
    %11 = vector.multi_reduction <maximumf>, %9, %cst_7 [1] : vector<16x8xf32> to vector<16xf32>
    %12 = vector.shape_cast %11 : vector<16xf32> to vector<16x1xf32>
    %13 = arith.maximumf %10, %12 : vector<16x1xf32>
    %14 = arith.subf %10, %13 : vector<16x1xf32>
    %15 = math.exp %14 : vector<16x1xf32>
    %16 = vector.broadcast %13 : vector<16x1xf32> to vector<16x8xf32>
    %17 = arith.subf %9, %16 : vector<16x8xf32>
    %18 = math.exp %17 : vector<16x8xf32>
    %c0_8 = arith.constant 0 : index
    %c0_9 = arith.constant 0 : index
    %19 = vector.load %arg8[%c0_8, %c0_9] : memref<16x1xf32, #tpu.memory_space<vmem>>, vector<16x1xf32>
    %20 = arith.mulf %15, %19 : vector<16x1xf32>
    %cst_10 = arith.constant dense<0.000000e+00> : vector<16xf32>
    %21 = vector.multi_reduction <add>, %18, %cst_10 [1] : vector<16x8xf32> to vector<16xf32>
    %22 = vector.shape_cast %21 : vector<16xf32> to vector<16x1xf32>
    %23 = arith.addf %20, %22 : vector<16x1xf32>
    %c0_11 = arith.constant 0 : index
    %c0_12 = arith.constant 0 : index
    %24 = vector.load %arg8[%c0_11, %c0_12] : memref<16x1xf32, #tpu.memory_space<vmem>>, vector<16x1xf32>
    tpu.vector_store %arg8[%c0_11, %c0_12], %23 {strides = array<i32>} : memref<16x1xf32, #tpu.memory_space<vmem>>, vector<16x1xf32>,
    %25 = arith.index_cast %arg1 : i32 to index
    %c0_13 = arith.constant 0 : index
    %c0_14 = arith.constant 0 : index
    %26 = vector.load %arg10[%25, %c0_13, %c0_14] : memref<2x16x8xf32, #tpu.memory_space<vmem>>, vector<1x16x8xf32>
    %27 = vector.shape_cast %26 : vector<1x16x8xf32> to vector<16x8xf32>
    %28 = vector.shape_cast %18 : vector<16x8xf32> to vector<1x16x8xf32>
    tpu.vector_store %arg10[%25, %c0_13, %c0_14], %28 {strides = array<i32>} : memref<2x16x8xf32, #tpu.memory_space<vmem>>, vector<1x16x8xf32>,
    %29 = arith.index_cast %arg1 : i32 to index
    %c0_15 = arith.constant 0 : index
    %c0_16 = arith.constant 0 : index
    %30 = vector.load %arg11[%29, %c0_15, %c0_16] : memref<2x16x1xf32, #tpu.memory_space<vmem>>, vector<1x16x1xf32>
    %31 = vector.shape_cast %30 : vector<1x16x1xf32> to vector<16x1xf32>
    %32 = vector.shape_cast %13 : vector<16x1xf32> to vector<1x16x1xf32>
    tpu.vector_store %arg11[%29, %c0_15, %c0_16], %32 {strides = array<i32>} : memref<2x16x1xf32, #tpu.memory_space<vmem>>, vector<1x16x1xf32>,
    %33 = tpu.transpose %18, [1, 0] : vector<16x8xf32> -> vector<8x16xf32>
    %34 = vector.shape_cast %33 : vector<8x16xf32> to vector<8x16x1xf32>
    %35 = vector.broadcast %34 : vector<8x16x1xf32> to vector<8x16x32xf32>
    %36 = arith.mulf %35, %3 : vector<8x16x32xf32>
    %cst_17 = arith.constant dense<0.000000e+00> : vector<16x32xf32>
    %37 = vector.multi_reduction <add>, %36, %cst_17 [0] : vector<8x16x32xf32> to vector<16x32xf32>
    %c0_18 = arith.constant 0 : index
    %c0_19 = arith.constant 0 : index
    %38 = vector.load %arg9[%c0_18, %c0_19] : memref<16x32xf32, #tpu.memory_space<vmem>>, vector<16x32xf32>
    %39 = vector.broadcast %15 : vector<16x1xf32> to vector<16x32xf32>
    %40 = arith.mulf %39, %38 : vector<16x32xf32>
    %41 = arith.addf %40, %37 : vector<16x32xf32>
    %c0_20 = arith.constant 0 : index
    %c0_21 = arith.constant 0 : index
    %42 = vector.load %arg9[%c0_20, %c0_21] : memref<16x32xf32, #tpu.memory_space<vmem>>, vector<16x32xf32>
    tpu.vector_store %arg9[%c0_20, %c0_21], %41 {strides = array<i32>} : memref<16x32xf32, #tpu.memory_space<vmem>>, vector<16x32xf32>,
    %c0_22 = arith.constant 0 : index
    %c0_23 = arith.constant 0 : index
    %43 = vector.load %arg7[%c0_22, %c0_23] : memref<16x1xf32, #tpu.memory_space<vmem>>, vector<16x1xf32>
    tpu.vector_store %arg7[%c0_22, %c0_23], %13 {strides = array<i32>} : memref<16x1xf32, #tpu.memory_space<vmem>>, vector<16x1xf32>,
    %c1_i32 = arith.constant 1 : i32
    %44 = arith.cmpi eq, %arg1, %c1_i32 : i32
    %45 = arith.extui %44 : i1 to i32
    %c0_i32_24 = arith.constant 0 : i32
    %46 = arith.cmpi ne, %45, %c0_i32_24 : i32
    scf.if %46 {
      %c0_25 = arith.constant 0 : index
      %c0_26 = arith.constant 0 : index
      %47 = vector.load %arg8[%c0_25, %c0_26] : memref<16x1xf32, #tpu.memory_space<vmem>>, vector<16x1xf32>
      %cst_27 = arith.constant 1.000000e+00 : f32
      %48 = vector.broadcast %cst_27 : f32 to vector<16x1xf32>
      %49 = arith.divf %48, %47 : vector<16x1xf32>
      %c0_28 = arith.constant 0 : index
      %c0_29 = arith.constant 0 : index
      %50 = vector.load %arg7[%c0_28, %c0_29] : memref<16x1xf32, #tpu.memory_space<vmem>>, vector<16x1xf32>
      %c0_30 = arith.constant 0 : index
      %c0_31 = arith.constant 0 : index
      %c0_32 = arith.constant 0 : index
      %51 = vector.load %arg11[%c0_30, %c0_31, %c0_32] : memref<2x16x1xf32, #tpu.memory_space<vmem>>, vector<1x16x1xf32>
      %52 = vector.shape_cast %51 : vector<1x16x1xf32> to vector<16x1xf32>
      %53 = arith.subf %52, %50 : vector<16x1xf32>
      %54 = math.exp %53 : vector<16x1xf32>
      %55 = arith.mulf %54, %49 : vector<16x1xf32>
      %c0_33 = arith.constant 0 : index
      %c0_34 = arith.constant 0 : index
      %c0_35 = arith.constant 0 : index
      %56 = vector.load %arg10[%c0_33, %c0_34, %c0_35] : memref<2x16x8xf32, #tpu.memory_space<vmem>>, vector<1x16x8xf32>
      %57 = vector.shape_cast %56 : vector<1x16x8xf32> to vector<16x8xf32>
      %58 = vector.broadcast %55 : vector<16x1xf32> to vector<16x8xf32>
      %59 = arith.mulf %57, %58 : vector<16x8xf32>
      %c0_36 = arith.constant 0 : index
      %c0_37 = arith.constant 0 : index
      %60 = vector.load %arg4[%c0_36, %c0_37] : memref<16x16xf32, #tpu.memory_space<vmem>>, vector<16x8xf32>
      tpu.vector_store %arg4[%c0_36, %c0_37], %59 {strides = array<i32>} : memref<16x16xf32, #tpu.memory_space<vmem>>, vector<16x8xf32>,
      %c1 = arith.constant 1 : index
      %c0_38 = arith.constant 0 : index
      %c0_39 = arith.constant 0 : index
      %61 = vector.load %arg11[%c1, %c0_38, %c0_39] : memref<2x16x1xf32, #tpu.memory_space<vmem>>, vector<1x16x1xf32>
      %62 = vector.shape_cast %61 : vector<1x16x1xf32> to vector<16x1xf32>
      %63 = arith.subf %62, %50 : vector<16x1xf32>
      %64 = math.exp %63 : vector<16x1xf32>
      %65 = arith.mulf %64, %49 : vector<16x1xf32>
      %c1_40 = arith.constant 1 : index
      %c0_41 = arith.constant 0 : index
      %c0_42 = arith.constant 0 : index
      %66 = vector.load %arg10[%c1_40, %c0_41, %c0_42] : memref<2x16x8xf32, #tpu.memory_space<vmem>>, vector<1x16x8xf32>
      %67 = vector.shape_cast %66 : vector<1x16x8xf32> to vector<16x8xf32>
      %68 = vector.broadcast %65 : vector<16x1xf32> to vector<16x8xf32>
      %69 = arith.mulf %67, %68 : vector<16x8xf32>
      %c0_43 = arith.constant 0 : index
      %c8 = arith.constant 8 : index
      %70 = vector.load %arg4[%c0_43, %c8] : memref<16x16xf32, #tpu.memory_space<vmem>>, vector<16x8xf32>
      tpu.vector_store %arg4[%c0_43, %c8], %69 {strides = array<i32>} : memref<16x16xf32, #tpu.memory_space<vmem>>, vector<16x8xf32>,
      %c0_44 = arith.constant 0 : index
      %c0_45 = arith.constant 0 : index
      %71 = vector.load %arg9[%c0_44, %c0_45] : memref<16x32xf32, #tpu.memory_space<vmem>>, vector<16x32xf32>
      %72 = vector.broadcast %49 : vector<16x1xf32> to vector<16x32xf32>
      %73 = arith.mulf %71, %72 : vector<16x32xf32>
      %c0_46 = arith.constant 0 : index
      %c0_47 = arith.constant 0 : index
      %74 = vector.load %arg5[%c0_46, %c0_47] : memref<16x32xf32, #tpu.memory_space<vmem>>, vector<16x32xf32>
      tpu.vector_store %arg5[%c0_46, %c0_47], %73 {strides = array<i32>} : memref<16x32xf32, #tpu.memory_space<vmem>>, vector<16x32xf32>,
    } else {
    }
    return
  }
  func.func @transform_0(%arg0: i32, %arg1: i32) -> (i32, i32) {
    %c0_i32 = arith.constant 0 : i32
    %c0_i32_0 = arith.constant 0 : i32
    return %arg0, %c0_i32 : i32, i32
  }
  func.func @transform_1(%arg0: i32, %arg1: i32) -> (i32, i32, i32) {
    %c0_i32 = arith.constant 0 : i32
    %c0_i32_0 = arith.constant 0 : i32
    return %arg1, %arg0, %c0_i32 : i32, i32, i32
  }
  func.func @transform_2(%arg0: i32, %arg1: i32) -> (i32, i32) {
    %c0_i32 = arith.constant 0 : i32
    %c0_i32_0 = arith.constant 0 : i32
    return %arg0, %c0_i32 : i32, i32
  }
  func.func @transform_3(%arg0: i32, %arg1: i32) -> (i32, i32) {
    %c0_i32 = arith.constant 0 : i32
    %c0_i32_0 = arith.constant 0 : i32
    return %arg0, %c0_i32 : i32, i32
  }
}

</mosaic_0001>

<llo_original>
// kernel: tpu_custom_call.1
$region0: #{tpu_custom_call.1}
  #allocation0 [shape = 'u32[]', space=smem, size = 0x4, offset = 0x4, fixed_abs, tag = 'smem constant byte address 0x4 - core index']
  #allocation1 [shape = 'u32[144,128]{1,0:T(1,128)}', space=vmem, size = 0x12000, scoped, tag = 'internal scratch']
  #allocation2 [shape = 'f32[16,32]{1,0:T(8,128)}', space=vmem, size = 0x2000, scoped, tag = 'scratch operand']
  #allocation3 [shape = 'f32[16,1]{1,0:T(8,128)}', space=vmem, size = 0x2000, scoped, tag = 'scratch operand']
  #allocation4 [shape = 'f32[16,1]{1,0:T(8,128)}', space=vmem, size = 0x2000, scoped, tag = 'scratch operand']
  #allocation5 [shape = 'f32[16,32]{1,0:T(8,128)}', space=vmem, size = 0x2000, scoped, tag = 'scratch operand']
  #allocation6 [shape = 'f32[2,16,8]{2,1,0:T(8,128)}', space=vmem, size = 0x4000, scoped, tag = 'scratch operand']
  #allocation7 [shape = 'f32[2,16,1]{2,1,0:T(8,128)}', space=vmem, size = 0x4000, scoped, tag = 'scratch operand']
  %s0 = inlined_call_operand.hbm [shape: f32[16,32], index: 0, kind: input, shape index: {}]
  %s1 = inlined_call_operand.hbm [shape: f32[16,16,32], index: 1, kind: input, shape index: {}]
  %s2 = inlined_call_operand.hbm [shape: f32[16,16], index: 2, kind: output, shape index: {0}]
  %s3 = inlined_call_operand.hbm [shape: f32[16,32], index: 3, kind: output, shape index: {1}]
  %4 = xla_tuple %s2, %s3
  %s5 = sld [smem:[#allocation0]]
  $region65: #{tpu_custom_call.1} parent=0
    _
  %s7 = ssub.s32 1, %s5
  %s8 = scalar_select 0, %s7, %s5
  $region1: #{tpu_custom_call.1} parent=0
    #allocation8 [shape = 'u8[8192]{0}', space=vmem, size = 0x2000, scoped, tag = 'input window, operand 0, single buffered']
    #allocation9 [shape = 's32[2]{0}', space=sflag, size = 0x8, scoped, tag = 'scoped memory for tpu_custom_call.1']
    #allocation10 [shape = 's32[2]{0}', space=sflag, size = 0x8, scoped, tag = 'scoped memory for tpu_custom_call.1']
    #allocation11 [shape = 'u8[131072]{0}', space=vmem, size = 0x20000, scoped, tag = 'input window, operand 1']
    #allocation12 [shape = 's32[2]{0}', space=sflag, size = 0x8, scoped, tag = 'scoped memory for tpu_custom_call.1']
    #allocation13 [shape = 'u8[8192]{0}', space=vmem, size = 0x2000, scoped, tag = 'output window, operand 0, single buffered']
    #allocation14 [shape = 'u8[8192]{0}', space=vmem, size = 0x2000, scoped, tag = 'output window, operand 1, single buffered']
    #allocation15 [shape = 's32[1]{0}', space=sflag, size = 0x4, scoped, tag = 'scoped memory for tpu_custom_call.1']
    %9 = vsyncpa [#allocation9], 0
    %10 = vsyncpa [#allocation12], 0
    %s11 = scalar_lea.sflag [#allocation12], 1
    %12 = vsyncpa %s11, 0
    %13 = vsyncpa [#allocation10], 0
    %14 = vsyncpa [#allocation15], 0
    loop: start=0, step=1, limit=4
    $region2: #{tpu_custom_call.1} parent=1 // loop_pre_header
      _
    $region3: #{tpu_custom_call.1} parent=1 // loop_header
      %s16 = sphi 0, %s20
      %p17 = scmp.ge.s32.totalorder %s16, 4
      %s23 = sphi 0, %s35
      %s24 = sphi 0, %s31
      %s25 = sphi 0, %s23
      %s26 = sphi 0, %s24
      %s27 = sphi 0, %s25
      %s28 = sphi 0, %s26
      %s38 = sphi 0, %s40
      %s41 = sphi 0, %s38
      %s42 = sphi 0, %s41
      %s58 = sphi 0, %s42
      %s66 = sphi 0, %s68
      %s69 = sphi 0, %s66
      %s70 = sphi 0, %s69
      %s86 = sphi 0, %s70
      %s92 = sphi 0, %s94
      %s95 = sphi 0, %s92
      %s96 = sphi 0, %s95
      %s112 = sphi 0, %s96
      %s118 = sphi 0, %s120
      %s121 = sphi 0, %s118
      %s122 = sphi 0, %s121
      %s138 = sphi 0, %s122
    $region4: #{tpu_custom_call.1} parent=1 // loop_header_branch
      %19 = sbr.rel (%p17) target = $region8
    $region5: #{tpu_custom_call.1} parent=1 // loop_body
      %s21 = ssub.s32 %s16, 1
      %s22 = ssub.s32 %s16, 2
      %s29 = sadd.s32 1, %s24
      %p30 = scmp.ge.s32.totalorder %s29, 2
      %s31 = scalar_select %p30, 0, %s29
      %s32 = sadd.s32 1, %s23
      %s33 = scalar_select %p30, %s32, %s23
      %p34 = scmp.ge.s32.totalorder %s33, 1
      %s35 = scalar_select %p34, 0, %s33
      %s36 = ssub.s32 %s23, %s35
      %p37 = scmp.eq.s32.totalorder %s36, 0
      %s39 = sadd.s32 %s38, 1
      %s40 = scalar_select %p37, %s38, %s39
      %p43 = pneg %p37
      %p44 = scmp.eq.s32.totalorder %s16, 1
      %p45 = por %p43, %p44
      %p46 = scmp.ne.s32.totalorder %s38, %s41
      %p47 = scmp.eq.s32.totalorder %s16, 0
      %p48 = por %p46, %p47
      %p49 = scmp.ne.s32.totalorder %s38, %s41
      %p50 = scmp.eq.s32.totalorder %s21, 1
      %p51 = por %p49, %p50
      %p52 = scmp.ne.s32.totalorder %s41, %s42
      %p53 = scmp.eq.s32.totalorder %s21, 0
      %p54 = por %p52, %p53
      %p55 = scmp.ne.s32.totalorder %s41, %s42
      %p56 = scmp.eq.s32.totalorder %s22, 1
      %p57 = por %p55, %p56
      %p59 = scmp.ne.s32.totalorder %s42, %s58
      %p60 = scmp.eq.s32.totalorder %s22, 0
      %p61 = por %p59, %p60
      %s62 = ssub.s32 %s24, %s31
      %s63 = ssub.s32 %s23, %s35
      %s64 = sor.u32 %s62, %s63
      %p65 = scmp.eq.s32.totalorder %s64, 0
      %s67 = sadd.s32 %s66, 1
      %s68 = scalar_select %p65, %s66, %s67
      %p71 = pneg %p65
      %p72 = scmp.eq.s32.totalorder %s16, 1
      %p73 = por %p71, %p72
      %p74 = scmp.ne.s32.totalorder %s66, %s69
      %p75 = scmp.eq.s32.totalorder %s16, 0
      %p76 = por %p74, %p75
      %p77 = scmp.ne.s32.totalorder %s66, %s69
      %p78 = scmp.eq.s32.totalorder %s21, 1
      %p79 = por %p77, %p78
      %p80 = scmp.ne.s32.totalorder %s69, %s70
      %p81 = scmp.eq.s32.totalorder %s21, 0
      %p82 = por %p80, %p81
      %p83 = scmp.ne.s32.totalorder %s69, %s70
      %p84 = scmp.eq.s32.totalorder %s22, 1
      %p85 = por %p83, %p84
      %p87 = scmp.ne.s32.totalorder %s70, %s86
      %p88 = scmp.eq.s32.totalorder %s22, 0
      %p89 = por %p87, %p88
      %s90 = ssub.s32 %s23, %s35
      %p91 = scmp.eq.s32.totalorder %s90, 0
      %s93 = sadd.s32 %s92, 1
      %s94 = scalar_select %p91, %s92, %s93
      %p97 = pneg %p91
      %p98 = scmp.eq.s32.totalorder %s16, 1
      %p99 = por %p97, %p98
      %p100 = scmp.ne.s32.totalorder %s92, %s95
      %p101 = scmp.eq.s32.totalorder %s16, 0
      %p102 = por %p100, %p101
      %p103 = scmp.ne.s32.totalorder %s92, %s95
      %p104 = scmp.eq.s32.totalorder %s21, 1
      %p105 = por %p103, %p104
      %p106 = scmp.ne.s32.totalorder %s95, %s96
      %p107 = scmp.eq.s32.totalorder %s21, 0
      %p108 = por %p106, %p107
      %p109 = scmp.ne.s32.totalorder %s95, %s96
      %p110 = scmp.eq.s32.totalorder %s22, 1
      %p111 = por %p109, %p110
      %p113 = scmp.ne.s32.totalorder %s96, %s112
      %p114 = scmp.eq.s32.totalorder %s22, 0
      %p115 = por %p113, %p114
      %s116 = ssub.s32 %s23, %s35
      %p117 = scmp.eq.s32.totalorder %s116, 0
      %s119 = sadd.s32 %s118, 1
      %s120 = scalar_select %p117, %s118, %s119
      %p123 = pneg %p117
      %p124 = scmp.eq.s32.totalorder %s16, 1
      %p125 = por %p123, %p124
      %p126 = scmp.ne.s32.totalorder %s118, %s121
      %p127 = scmp.eq.s32.totalorder %s16, 0
      %p128 = por %p126, %p127
      %p129 = scmp.ne.s32.totalorder %s118, %s121
      %p130 = scmp.eq.s32.totalorder %s21, 1
      %p131 = por %p129, %p130
      %p132 = scmp.ne.s32.totalorder %s121, %s122
      %p133 = scmp.eq.s32.totalorder %s21, 0
      %p134 = por %p132, %p133
      %p135 = scmp.ne.s32.totalorder %s121, %s122
      %p136 = scmp.eq.s32.totalorder %s22, 1
      %p137 = por %p135, %p136
      %p139 = scmp.ne.s32.totalorder %s122, %s138
      %p140 = scmp.eq.s32.totalorder %s22, 0
      %p141 = por %p139, %p140
      %p142 = scmp.le.s32.totalorder 1, %s16
      %p143 = scmp.lt.s32.totalorder %s16, 3
      %p144 = pnand %p142, %p143
      %p145 = pneg %p144
      // Predicated region
      $region9: #{tpu_custom_call.1} parent=5 // pred_check
        _
      $region10: #{tpu_custom_call.1} parent=5 // pred_check_branch
        %147 = sbr.rel (%p144) target = $region12
      $region11: #{tpu_custom_call.1} parent=5 // pred_region
        %s148 = ssub.s32 %s16, 1
        // Predicated region
        $region13: #{tpu_custom_call.1} parent=11 // pred_check
          %p149 = pneg %p54
        $region14: #{tpu_custom_call.1} parent=11 // pred_check_branch
          %151 = sbr.rel (%p149) target = $region16
        $region15: #{tpu_custom_call.1} parent=11 // pred_region
          %s152 = smul.u32 2, %s25
          %s154 = ssub.s32 256, 256
          %155 = vsyncadd [#allocation9], %s154
          %s156 = smul.addr %s152, 128
          %s157 = scalar_lea.hbm %s0, %s156
          %s158 = sshll.u32 [#allocation8], 4
          %s159 = int_to_ptr.vmem [resolvable:$true] %s158
          %164 = dma.hbm_to_vmem [thread:$0]  %s157, 256, %s159, [#allocation9], 128, 128, 8
        $region16: #{tpu_custom_call.1} parent=11 // pred_fallthru
          _
      $region12: #{tpu_custom_call.1} parent=5 // pred_fallthru
        _
      %p165 = scmp.lt.s32.totalorder %s16, 2
      // Predicated region
      $region17: #{tpu_custom_call.1} parent=5 // pred_check
        %p166 = pneg %p165
      $region18: #{tpu_custom_call.1} parent=5 // pred_check_branch
        %168 = sbr.rel (%p166) target = $region20
      $region19: #{tpu_custom_call.1} parent=5 // pred_region
        // Predicated region
        $region21: #{tpu_custom_call.1} parent=19 // pred_check
          %p169 = pneg %p76
        $region22: #{tpu_custom_call.1} parent=19 // pred_check_branch
          %171 = sbr.rel (%p169) target = $region24
        $region23: #{tpu_custom_call.1} parent=19 // pred_region
          %s172 = sand.u32 %s66, 1
          %s173 = scalar_lea.sflag [#allocation12], %s172
          %s174 = sand.u32 %s66, 1
          %s175 = smul.addr %s174, 128
          %s176 = scalar_lea.vmem [#allocation11], %s175
          %s177 = smul.u32 8, %s24
          %s178 = smul.u32 2, %s23
          %s180 = ssub.s32 2048, 2048
          %181 = vsyncadd %s173, %s180
          %s182 = smul.addr %s177, 2
          %s183 = sadd.s32 %s178, %s182
          %s184 = smul.addr %s183, 128
          %s185 = scalar_lea.hbm %s1, %s184
          %s186 = sshll.u32 %s176, 4
          %s187 = int_to_ptr.vmem [resolvable:$true] %s186
          %192 = dma.hbm_to_vmem [thread:$0]  %s185, 2048, %s187, %s173, 128, 128, 8
        $region24: #{tpu_custom_call.1} parent=19 // pred_fallthru
          _
      $region20: #{tpu_custom_call.1} parent=5 // pred_fallthru
        _
      %p193 = scmp.le.s32.totalorder 1, %s16
      %p194 = scmp.lt.s32.totalorder %s16, 3
      %p195 = pnand %p193, %p194
      %p196 = pneg %p195
      // Predicated region
      $region25: #{tpu_custom_call.1} parent=5 // pred_check
        _
      $region26: #{tpu_custom_call.1} parent=5 // pred_check_branch
        %198 = sbr.rel (%p195) target = $region28
      $region27: #{tpu_custom_call.1} parent=5 // pred_region
        %s199 = ssub.s32 %s16, 1
        // Predicated region
        $region29: #{tpu_custom_call.1} parent=27 // pred_check
          %p200 = pneg %p54
        $region30: #{tpu_custom_call.1} parent=27 // pred_check_branch
          %202 = sbr.rel (%p200) target = $region32
        $region31: #{tpu_custom_call.1} parent=27 // pred_region
          %203 = dma.done [#allocation9], 256
        $region32: #{tpu_custom_call.1} parent=27 // pred_fallthru
          _
        %s204 = sand.u32 %s69, 1
        %s205 = scalar_lea.sflag [#allocation12], %s204
        %s206 = sand.u32 %s69, 1
        %s207 = smul.addr %s206, 128
        %s208 = scalar_lea.vmem [#allocation11], %s207
        // Predicated region
        $region33: #{tpu_custom_call.1} parent=27 // pred_check
          %p209 = pneg %p82
        $region34: #{tpu_custom_call.1} parent=27 // pred_check_branch
          %211 = sbr.rel (%p209) target = $region36
        $region35: #{tpu_custom_call.1} parent=27 // pred_region
          %212 = dma.done %s205, 2048
        $region36: #{tpu_custom_call.1} parent=27 // pred_fallthru
          _
        %p213 = pneg %p54
        %p214 = pneg %p51
        %s215 = sand.u32 %s69, 1
        %s216 = scalar_lea.sflag [#allocation12], %s215
        %s217 = sand.u32 %s69, 1
        %s218 = smul.addr %s217, 128
        %s219 = scalar_lea.vmem [#allocation11], %s218
        %p220 = pneg %p82
        %p221 = pneg %p79
        %p222 = pneg %p108
        %p223 = pneg %p105
        %p224 = pneg %p134
        %p225 = pneg %p131
        %s226 = smul.u32 2, %s25
        %s227 = smul.u32 8, %s26
        %s228 = smul.u32 2, %s25
        %s229 = smul.u32 2, %s25
        %s230 = smul.u32 2, %s25
        %p231 = scmp.eq.s32.totalorder %s26, 0
        // Predicated region
        $region37: #{tpu_custom_call.1} parent=27 // pred_check
          %p232 = pneg %p231
        $region38: #{tpu_custom_call.1} parent=27 // pred_check_branch
          %234 = sbr.rel (%p232) target = $region40
        $region39: #{tpu_custom_call.1} parent=27 // pred_region
          %v235 = vld [vmem:[#allocation8] sm:$0xff]
          %v236 = vld [vmem:[#allocation8 + $0x8] sm:$0xff]
          %vm237 = vcmask 261120
          %238 = vst.msk [vmem:[#allocation2] sm:$0xff] %vm237, %v235
          %239 = vst.msk [vmem:[#allocation2 + $0x8] sm:$0xff] %vm237, %v236
          %vm240 = vcmask 7168
          %241 = vst.msk [vmem:[#allocation3] sm:$0xff] %vm240, -inf
          %242 = vst.msk [vmem:[#allocation3 + $0x8] sm:$0xff] %vm240, -inf
          %243 = vst.msk [vmem:[#allocation4] sm:$0xff] %vm240, 0.0
          %244 = vst.msk [vmem:[#allocation4 + $0x8] sm:$0xff] %vm240, 0.0
          %245 = vst.msk [vmem:[#allocation5] sm:$0xff] %vm237, 0.0
          %246 = vst.msk [vmem:[#allocation5 + $0x8] sm:$0xff] %vm237, 0.0
        $region40: #{tpu_custom_call.1} parent=27 // pred_fallthru
          _
        %v247 = vld [vmem:[%s208] sm:$0xff]
        %v248 = vld [vmem:[%s208 + $0x8] sm:$0xff]
        %v249 = vld [vmem:[%s208 + $0x10] sm:$0xff]
        %v250 = vld [vmem:[%s208 + $0x18] sm:$0xff]
        %v251 = vld [vmem:[%s208 + $0x20] sm:$0xff]
        %v252 = vld [vmem:[%s208 + $0x28] sm:$0xff]
        %v253 = vld [vmem:[%s208 + $0x30] sm:$0xff]
        %v254 = vld [vmem:[%s208 + $0x38] sm:$0xff]
        %v255 = vld [vmem:[%s208 + $0x40] sm:$0xff]
        %v256 = vld [vmem:[%s208 + $0x48] sm:$0xff]
        %v257 = vld [vmem:[%s208 + $0x50] sm:$0xff]
        %v258 = vld [vmem:[%s208 + $0x58] sm:$0xff]
        %v259 = vld [vmem:[%s208 + $0x60] sm:$0xff]
        %v260 = vld [vmem:[%s208 + $0x68] sm:$0xff]
        %v261 = vld [vmem:[%s208 + $0x70] sm:$0xff]
        %v262 = vld [vmem:[%s208 + $0x78] sm:$0xff]
        %v263 = vld [vmem:[#allocation2] sm:$0xff]
        %v264 = vld [vmem:[#allocation2 + $0x8] sm:$0xff]
        %v265 = vmul.f32 %v247, %v263
        %v266 = vmul.f32 %v248, %v264
        %v267 = vmul.f32 %v249, %v263
        %v268 = vmul.f32 %v250, %v264
        %v269 = vmul.f32 %v251, %v263
        %v270 = vmul.f32 %v252, %v264
        %v271 = vmul.f32 %v253, %v263
        %v272 = vmul.f32 %v254, %v264
        %v273 = vmul.f32 %v255, %v263
        %v274 = vmul.f32 %v256, %v264
        %v275 = vmul.f32 %v257, %v263
        %v276 = vmul.f32 %v258, %v264
        %v277 = vmul.f32 %v259, %v263
        %v278 = vmul.f32 %v260, %v264
        %v279 = vmul.f32 %v261, %v263
        %v280 = vmul.f32 %v262, %v264
        %vm281 = vcmask 261120
        %v282 = vsel %vm281, %v265, 0.0
        %283 = vadd.xlane.f32.xlu0 %v282
        %v284 = vpop.xlane.xlu0 %283
        %v285 = vsel %vm281, %v266, 0.0
        %286 = vadd.xlane.f32.xlu0 %v285
        %v287 = vpop.xlane.xlu0 %286
        %v288 = vsel %vm281, %v267, 0.0
        %289 = vadd.xlane.f32.xlu0 %v288
        %v290 = vpop.xlane.xlu0 %289
        %v291 = vsel %vm281, %v268, 0.0
        %292 = vadd.xlane.f32.xlu0 %v291
        %v293 = vpop.xlane.xlu0 %292
        %v294 = vsel %vm281, %v269, 0.0
        %295 = vadd.xlane.f32.xlu0 %v294
        %v296 = vpop.xlane.xlu0 %295
        %v297 = vsel %vm281, %v270, 0.0
        %298 = vadd.xlane.f32.xlu0 %v297
        %v299 = vpop.xlane.xlu0 %298
        %v300 = vsel %vm281, %v271, 0.0
        %301 = vadd.xlane.f32.xlu0 %v300
        %v302 = vpop.xlane.xlu0 %301
        %v303 = vsel %vm281, %v272, 0.0
        %304 = vadd.xlane.f32.xlu0 %v303
        %v305 = vpop.xlane.xlu0 %304
        %v306 = vsel %vm281, %v273, 0.0
        %307 = vadd.xlane.f32.xlu0 %v306
        %v308 = vpop.xlane.xlu0 %307
        %v309 = vsel %vm281, %v274, 0.0
        %310 = vadd.xlane.f32.xlu0 %v309
        %v311 = vpop.xlane.xlu0 %310
        %v312 = vsel %vm281, %v275, 0.0
        %313 = vadd.xlane.f32.xlu0 %v312
        %v314 = vpop.xlane.xlu0 %313
        %v315 = vsel %vm281, %v276, 0.0
        %316 = vadd.xlane.f32.xlu0 %v315
        %v317 = vpop.xlane.xlu0 %316
        %v318 = vsel %vm281, %v277, 0.0
        %319 = vadd.xlane.f32.xlu0 %v318
        %v320 = vpop.xlane.xlu0 %319
        %v321 = vsel %vm281, %v278, 0.0
        %322 = vadd.xlane.f32.xlu0 %v321
        %v323 = vpop.xlane.xlu0 %322
        %v324 = vsel %vm281, %v279, 0.0
        %325 = vadd.xlane.f32.xlu0 %v324
        %v326 = vpop.xlane.xlu0 %325
        %v327 = vsel %vm281, %v280, 0.0
        %328 = vadd.xlane.f32.xlu0 %v327
        %v329 = vpop.xlane.xlu0 %328
        %v346 = vlaneseq
        %v347 = vand.u32 %v346, 127
        %v348 = vlaneseq
        %v349 = vshrl.u32 %v348, 7
        %v350 = vsub.s32 %v347, %v349
        %v351 = vrot.slane %v284, %v350
        %v352 = vadd.s32 %v347, 4294967288
        %v353 = vlaneseq
        %v354 = vshrl.u32 %v353, 7
        %v355 = vsub.s32 %v352, %v354
        %v356 = vrot.slane %v287, %v355
        %vm357 = vcmask 130112
        %v358 = vsel %vm357, %v356, %v351
        %v359 = vlaneseq
        %v360 = vshrl.u32 %v359, 7
        %v361 = vsub.s32 %v347, %v360
        %v362 = vrot.slane %v290, %v361
        %v363 = vlaneseq
        %v364 = vshrl.u32 %v363, 7
        %v365 = vsub.s32 %v352, %v364
        %v366 = vrot.slane %v293, %v365
        %v367 = vsel %vm357, %v366, %v362
        %v368 = vlaneseq
        %v369 = vshrl.u32 %v368, 7
        %v370 = vsub.s32 %v347, %v369
        %v371 = vrot.slane %v296, %v370
        %v372 = vlaneseq
        %v373 = vshrl.u32 %v372, 7
        %v374 = vsub.s32 %v352, %v373
        %v375 = vrot.slane %v299, %v374
        %v376 = vsel %vm357, %v375, %v371
        %v377 = vlaneseq
        %v378 = vshrl.u32 %v377, 7
        %v379 = vsub.s32 %v347, %v378
        %v380 = vrot.slane %v302, %v379
        %v381 = vlaneseq
        %v382 = vshrl.u32 %v381, 7
        %v383 = vsub.s32 %v352, %v382
        %v384 = vrot.slane %v305, %v383
        %v385 = vsel %vm357, %v384, %v380
        %v386 = vlaneseq
        %v387 = vshrl.u32 %v386, 7
        %v388 = vsub.s32 %v347, %v387
        %v389 = vrot.slane %v308, %v388
        %v390 = vlaneseq
        %v391 = vshrl.u32 %v390, 7
        %v392 = vsub.s32 %v352, %v391
        %v393 = vrot.slane %v311, %v392
        %v394 = vsel %vm357, %v393, %v389
        %v395 = vlaneseq
        %v396 = vshrl.u32 %v395, 7
        %v397 = vsub.s32 %v347, %v396
        %v398 = vrot.slane %v314, %v397
        %v399 = vlaneseq
        %v400 = vshrl.u32 %v399, 7
        %v401 = vsub.s32 %v352, %v400
        %v402 = vrot.slane %v317, %v401
        %v403 = vsel %vm357, %v402, %v398
        %v404 = vlaneseq
        %v405 = vshrl.u32 %v404, 7
        %v406 = vsub.s32 %v347, %v405
        %v407 = vrot.slane %v320, %v406
        %v408 = vlaneseq
        %v409 = vshrl.u32 %v408, 7
        %v410 = vsub.s32 %v352, %v409
        %v411 = vrot.slane %v323, %v410
        %v412 = vsel %vm357, %v411, %v407
        %v413 = vlaneseq
        %v414 = vshrl.u32 %v413, 7
        %v415 = vsub.s32 %v347, %v414
        %v416 = vrot.slane %v326, %v415
        %v417 = vlaneseq
        %v418 = vshrl.u32 %v417, 7
        %v419 = vsub.s32 %v352, %v418
        %v420 = vrot.slane %v329, %v419
        %v421 = vsel %vm357, %v420, %v416
        %vm422 = vcmask 1041409
        %v423 = vsel %vm422, %v367, %v358
        %vm424 = vcmask 1042434
        %v425 = vsel %vm424, %v376, %v423
        %vm426 = vcmask 1043459
        %v427 = vsel %vm426, %v385, %v425
        %vm428 = vcmask 1044484
        %v429 = vsel %vm428, %v394, %v427
        %vm430 = vcmask 1045509
        %v431 = vsel %vm430, %v403, %v429
        %vm432 = vcmask 1046534
        %v433 = vsel %vm432, %v412, %v431
        %vm434 = vcmask 1047559
        %v435 = vsel %vm434, %v421, %v433
        %437 = vxpose.xlu0.b32.start [1/16] %v435, 128
        %438 = vxpose.xlu0.b32.cont [2/16] 0.0, 128
        %439 = vxpose.xlu0.b32.cont [3/16] 0.0, 128
        %440 = vxpose.xlu0.b32.cont [4/16] 0.0, 128
        %441 = vxpose.xlu0.b32.cont [5/16] 0.0, 128
        %442 = vxpose.xlu0.b32.cont [6/16] 0.0, 128
        %443 = vxpose.xlu0.b32.cont [7/16] 0.0, 128
        %444 = vxpose.xlu0.b32.cont [8/16] 0.0, 128
        %445 = vxpose.xlu0.b32.cont [9/16] 0.0, 128
        %446 = vxpose.xlu0.b32.cont [10/16] 0.0, 128
        %447 = vxpose.xlu0.b32.cont [11/16] 0.0, 128
        %448 = vxpose.xlu0.b32.cont [12/16] 0.0, 128
        %449 = vxpose.xlu0.b32.cont [13/16] 0.0, 128
        %450 = vxpose.xlu0.b32.cont [14/16] 0.0, 128
        %451 = vxpose.xlu0.b32.cont [15/16] 0.0, 128
        %452 = vxpose.xlu0.b32.end [16/16] 0.0, 128
        %v453 = vpop.trf.xlu0
        %v454 = vpop.trf.xlu0
        %v455 = vpop.trf.xlu0
        %v456 = vpop.trf.xlu0
        %v457 = vpop.trf.xlu0
        %v458 = vpop.trf.xlu0
        %v459 = vpop.trf.xlu0
        %v460 = vpop.trf.xlu0
        %v461 = vpop.trf.xlu0
        %v462 = vpop.trf.xlu0
        %v463 = vpop.trf.xlu0
        %v464 = vpop.trf.xlu0
        %v465 = vpop.trf.xlu0
        %v466 = vpop.trf.xlu0
        %v467 = vpop.trf.xlu0
        %v468 = vpop.trf.xlu0
        %v469 = vld [vmem:[#allocation3] sm:$0xff]
        %v470 = vld [vmem:[#allocation3 + $0x8] sm:$0xff]
        %vm471 = vcmask 64512
        %v472 = vsel %vm471, %v453, -inf
        %473 = vmax.xlane.f32.xlu0 %v472
        %v474 = vpop.xlane.xlu0 %473
        %v475 = vsel %vm471, %v454, -inf
        %476 = vmax.xlane.f32.xlu0 %v475
        %v477 = vpop.xlane.xlu0 %476
        %v478 = vmax.f32 %v469, %v474
        %v479 = vmax.f32 %v470, %v477
        %v480 = vsub.f32 %v469, %v478
        %v481 = vsub.f32 %v470, %v479
        %v482 = vmul.f32 %v480, 1.442695
        %v483 = vpow.pop %v482
        %v484 = vmul.f32 %v481, 1.442695
        %v485 = vpow.pop %v484
        %487 = vset.pattern.permute.xlu0 0
        %488 = vperm.xlu0 %487, %v478
        %v489 = vpop.permute.xlu0 %488
        %492 = vset.pattern.permute.xlu0 0
        %493 = vperm.xlu0 %492, %v479
        %v494 = vpop.permute.xlu0 %493
        %v496 = vsub.f32 %v453, %v489
        %v497 = vsub.f32 %v454, %v494
        %v498 = vmul.f32 %v496, 1.442695
        %v499 = vpow.pop %v498
        %v500 = vmul.f32 %v497, 1.442695
        %v501 = vpow.pop %v500
        %v502 = vld [vmem:[#allocation4] sm:$0xff]
        %v503 = vld [vmem:[#allocation4 + $0x8] sm:$0xff]
        %v504 = vmul.f32 %v483, %v502
        %v505 = vmul.f32 %v485, %v503
        %v506 = vsel %vm471, %v499, 0.0
        %507 = vadd.xlane.f32.xlu0 %v506
        %v508 = vpop.xlane.xlu0 %507
        %v509 = vsel %vm471, %v501, 0.0
        %510 = vadd.xlane.f32.xlu0 %v509
        %v511 = vpop.xlane.xlu0 %510
        %v512 = vadd.f32 %v504, %v508
        %v513 = vadd.f32 %v505, %v511
        %vm514 = vcmask 7168
        %515 = vst.msk [vmem:[#allocation4] sm:$0xff] %vm514, %v512
        %516 = vst.msk [vmem:[#allocation4 + $0x8] sm:$0xff] %vm514, %v513
        %s517 = smul.u32 %s26, 16
        %s518 = scalar_lea.vmem [#allocation6], %s517
        %519 = vst.msk [vmem:[%s518] sm:$0xff] %vm471, %v499
        %520 = vst.msk [vmem:[%s518 + $0x8] sm:$0xff] %vm471, %v501
        %s521 = scalar_lea.vmem [#allocation7], %s517
        %522 = vst.msk [vmem:[%s521] sm:$0xff] %vm514, %v478
        %523 = vst.msk [vmem:[%s521 + $0x8] sm:$0xff] %vm514, %v479
        %524 = vxpose.xlu0.b32.start [1/16] %v499, 128
        %525 = vxpose.xlu0.b32.cont [2/16] %v501, 128
        %526 = vxpose.xlu0.b32.cont [3/16] 0.0, 128
        %527 = vxpose.xlu0.b32.cont [4/16] 0.0, 128
        %528 = vxpose.xlu0.b32.cont [5/16] 0.0, 128
        %529 = vxpose.xlu0.b32.cont [6/16] 0.0, 128
        %530 = vxpose.xlu0.b32.cont [7/16] 0.0, 128
        %531 = vxpose.xlu0.b32.cont [8/16] 0.0, 128
        %532 = vxpose.xlu0.b32.cont [9/16] 0.0, 128
        %533 = vxpose.xlu0.b32.cont [10/16] 0.0, 128
        %534 = vxpose.xlu0.b32.cont [11/16] 0.0, 128
        %535 = vxpose.xlu0.b32.cont [12/16] 0.0, 128
        %536 = vxpose.xlu0.b32.cont [13/16] 0.0, 128
        %537 = vxpose.xlu0.b32.cont [14/16] 0.0, 128
        %538 = vxpose.xlu0.b32.cont [15/16] 0.0, 128
        %539 = vxpose.xlu0.b32.end [16/16] 0.0, 128
        %v540 = vpop.trf.xlu0
        %v541 = vpop.trf.xlu0
        %v542 = vpop.trf.xlu0
        %v543 = vpop.trf.xlu0
        %v544 = vpop.trf.xlu0
        %v545 = vpop.trf.xlu0
        %v546 = vpop.trf.xlu0
        %v547 = vpop.trf.xlu0
        %v548 = vpop.trf.xlu0
        %v549 = vpop.trf.xlu0
        %v550 = vpop.trf.xlu0
        %v551 = vpop.trf.xlu0
        %v552 = vpop.trf.xlu0
        %v553 = vpop.trf.xlu0
        %v554 = vpop.trf.xlu0
        %v555 = vpop.trf.xlu0
        %v556 = vlaneseq
        %v557 = vshrl.u32 %v556, 7
        %v558 = vsub.s32 0, %v557
        %v559 = vrot.slane %v540, %v558
        %561 = vbcast.lane.b32.xlu0 %v559, 256
        %v562 = vpop.permute.xlu0 %561
        %s564 = sor.u32 256, 8
        %565 = vbcast.lane.b32.xlu0 %v559, %s564
        %v566 = vpop.permute.xlu0 %565
        %v567 = vlaneseq
        %v568 = vshrl.u32 %v567, 7
        %v569 = vsub.s32 1, %v568
        %v570 = vrot.slane %v540, %v569
        %572 = vbcast.lane.b32.xlu0 %v570, 256
        %v573 = vpop.permute.xlu0 %572
        %s575 = sor.u32 256, 8
        %576 = vbcast.lane.b32.xlu0 %v570, %s575
        %v577 = vpop.permute.xlu0 %576
        %v578 = vlaneseq
        %v579 = vshrl.u32 %v578, 7
        %v580 = vsub.s32 2, %v579
        %v581 = vrot.slane %v540, %v580
        %583 = vbcast.lane.b32.xlu0 %v581, 256
        %v584 = vpop.permute.xlu0 %583
        %s586 = sor.u32 256, 8
        %587 = vbcast.lane.b32.xlu0 %v581, %s586
        %v588 = vpop.permute.xlu0 %587
        %v589 = vlaneseq
        %v590 = vshrl.u32 %v589, 7
        %v591 = vsub.s32 3, %v590
        %v592 = vrot.slane %v540, %v591
        %594 = vbcast.lane.b32.xlu0 %v592, 256
        %v595 = vpop.permute.xlu0 %594
        %s597 = sor.u32 256, 8
        %598 = vbcast.lane.b32.xlu0 %v592, %s597
        %v599 = vpop.permute.xlu0 %598
        %v600 = vlaneseq
        %v601 = vshrl.u32 %v600, 7
        %v602 = vsub.s32 4, %v601
        %v603 = vrot.slane %v540, %v602
        %605 = vbcast.lane.b32.xlu0 %v603, 256
        %v606 = vpop.permute.xlu0 %605
        %s608 = sor.u32 256, 8
        %609 = vbcast.lane.b32.xlu0 %v603, %s608
        %v610 = vpop.permute.xlu0 %609
        %v611 = vlaneseq
        %v612 = vshrl.u32 %v611, 7
        %v613 = vsub.s32 5, %v612
        %v614 = vrot.slane %v540, %v613
        %616 = vbcast.lane.b32.xlu0 %v614, 256
        %v617 = vpop.permute.xlu0 %616
        %s619 = sor.u32 256, 8
        %620 = vbcast.lane.b32.xlu0 %v614, %s619
        %v621 = vpop.permute.xlu0 %620
        %v622 = vlaneseq
        %v623 = vshrl.u32 %v622, 7
        %v624 = vsub.s32 6, %v623
        %v625 = vrot.slane %v540, %v624
        %627 = vbcast.lane.b32.xlu0 %v625, 256
        %v628 = vpop.permute.xlu0 %627
        %s630 = sor.u32 256, 8
        %631 = vbcast.lane.b32.xlu0 %v625, %s630
        %v632 = vpop.permute.xlu0 %631
        %v633 = vlaneseq
        %v634 = vshrl.u32 %v633, 7
        %v635 = vsub.s32 7, %v634
        %v636 = vrot.slane %v540, %v635
        %638 = vbcast.lane.b32.xlu0 %v636, 256
        %v639 = vpop.permute.xlu0 %638
        %s641 = sor.u32 256, 8
        %642 = vbcast.lane.b32.xlu0 %v636, %s641
        %v643 = vpop.permute.xlu0 %642
        %v644 = vmul.f32 %v562, %v247
        %v645 = vmul.f32 %v566, %v248
        %v646 = vmul.f32 %v573, %v249
        %v647 = vmul.f32 %v577, %v250
        %v648 = vmul.f32 %v584, %v251
        %v649 = vmul.f32 %v588, %v252
        %v650 = vmul.f32 %v595, %v253
        %v651 = vmul.f32 %v599, %v254
        %v652 = vmul.f32 %v606, %v255
        %v653 = vmul.f32 %v610, %v256
        %v654 = vmul.f32 %v617, %v257
        %v655 = vmul.f32 %v621, %v258
        %v656 = vmul.f32 %v628, %v259
        %v657 = vmul.f32 %v632, %v260
        %v658 = vmul.f32 %v639, %v261
        %v659 = vmul.f32 %v643, %v262
        %v660 = vsel %vm281, %v644, 0.0
        %v661 = vsel %vm281, %v646, 0.0
        %v662 = vadd.f32 %v660, %v661
        %v663 = vsel %vm281, %v648, 0.0
        %v664 = vadd.f32 %v662, %v663
        %v665 = vsel %vm281, %v650, 0.0
        %v666 = vadd.f32 %v664, %v665
        %v667 = vsel %vm281, %v652, 0.0
        %v668 = vadd.f32 %v666, %v667
        %v669 = vsel %vm281, %v654, 0.0
        %v670 = vadd.f32 %v668, %v669
        %v671 = vsel %vm281, %v656, 0.0
        %v672 = vadd.f32 %v670, %v671
        %v673 = vsel %vm281, %v658, 0.0
        %v674 = vadd.f32 %v672, %v673
        %v675 = vsel %vm281, %v645, 0.0
        %v676 = vsel %vm281, %v647, 0.0
        %v677 = vadd.f32 %v675, %v676
        %v678 = vsel %vm281, %v649, 0.0
        %v679 = vadd.f32 %v677, %v678
        %v680 = vsel %vm281, %v651, 0.0
        %v681 = vadd.f32 %v679, %v680
        %v682 = vsel %vm281, %v653, 0.0
        %v683 = vadd.f32 %v681, %v682
        %v684 = vsel %vm281, %v655, 0.0
        %v685 = vadd.f32 %v683, %v684
        %v686 = vsel %vm281, %v657, 0.0
        %v687 = vadd.f32 %v685, %v686
        %v688 = vsel %vm281, %v659, 0.0
        %v689 = vadd.f32 %v687, %v688
        %v690 = vld [vmem:[#allocation5] sm:$0xff]
        %v691 = vld [vmem:[#allocation5 + $0x8] sm:$0xff]
        %693 = vset.pattern.permute.xlu0 0
        %694 = vperm.xlu0 %693, %v483
        %v695 = vpop.permute.xlu0 %694
        %698 = vset.pattern.permute.xlu0 0
        %699 = vperm.xlu0 %698, %v485
        %v700 = vpop.permute.xlu0 %699
        %v702 = vmul.f32 %v695, %v690
        %v703 = vmul.f32 %v700, %v691
        %v704 = vadd.f32 %v702, %v674
        %v705 = vadd.f32 %v703, %v689
        %706 = vst.msk [vmem:[#allocation5] sm:$0xff] %vm281, %v704
        %707 = vst.msk [vmem:[#allocation5 + $0x8] sm:$0xff] %vm281, %v705
        %708 = vst.msk [vmem:[#allocation3] sm:$0xff] %vm514, %v478
        %709 = vst.msk [vmem:[#allocation3 + $0x8] sm:$0xff] %vm514, %v479
        %p710 = scmp.eq.s32.totalorder %s26, 1
        // Predicated region
        $region41: #{tpu_custom_call.1} parent=27 // pred_check
          %p711 = pneg %p710
        $region42: #{tpu_custom_call.1} parent=27 // pred_check_branch
          %713 = sbr.rel (%p711) target = $region44
        $region43: #{tpu_custom_call.1} parent=27 // pred_region
          %v714 = vld [vmem:[#allocation4] sm:$0xff]
          %v715 = vld [vmem:[#allocation4 + $0x8] sm:$0xff]
          %v716 = vrcp.pop %v714
          %v717 = vmul.f32 1.0, %v716
          %v718 = vrcp.pop %v715
          %v719 = vmul.f32 1.0, %v718
          %v720 = vld [vmem:[#allocation3] sm:$0xff]
          %v721 = vld [vmem:[#allocation3 + $0x8] sm:$0xff]
          %v722 = vld [vmem:[#allocation7] sm:$0xff]
          %v723 = vld [vmem:[#allocation7 + $0x8] sm:$0xff]
          %v724 = vsub.f32 %v722, %v720
          %v725 = vsub.f32 %v723, %v721
          %v726 = vmul.f32 %v724, 1.442695
          %v727 = vpow.pop %v726
          %v728 = vmul.f32 %v725, 1.442695
          %v729 = vpow.pop %v728
          %v730 = vmul.f32 %v727, %v717
          %v731 = vmul.f32 %v729, %v719
          %v732 = vld [vmem:[#allocation6] sm:$0xff]
          %v733 = vld [vmem:[#allocation6 + $0x8] sm:$0xff]
          %735 = vset.pattern.permute.xlu0 0
          %736 = vperm.xlu0 %735, %v730
          %v737 = vpop.permute.xlu0 %736
          %740 = vset.pattern.permute.xlu0 0
          %741 = vperm.xlu0 %740, %v731
          %v742 = vpop.permute.xlu0 %741
          %v744 = vmul.f32 %v732, %v737
          %v745 = vmul.f32 %v733, %v742
          %746 = vst.msk [vmem:[#allocation13] sm:$0xff] %vm471, %v744
          %747 = vst.msk [vmem:[#allocation13 + $0x8] sm:$0xff] %vm471, %v745
          %s748 = scalar_lea.vmem [#allocation7], 16
          %v749 = vld [vmem:[%s748] sm:$0xff]
          %v750 = vld [vmem:[%s748 + $0x8] sm:$0xff]
          %v751 = vsub.f32 %v749, %v720
          %v752 = vsub.f32 %v750, %v721
          %v753 = vmul.f32 %v751, 1.442695
          %v754 = vpow.pop %v753
          %v755 = vmul.f32 %v752, 1.442695
          %v756 = vpow.pop %v755
          %v757 = vmul.f32 %v754, %v717
          %v758 = vmul.f32 %v756, %v719
          %s759 = scalar_lea.vmem [#allocation6], 16
          %v760 = vld [vmem:[%s759] sm:$0xff]
          %v761 = vld [vmem:[%s759 + $0x8] sm:$0xff]
          %763 = vset.pattern.permute.xlu0 0
          %764 = vperm.xlu0 %763, %v757
          %v765 = vpop.permute.xlu0 %764
          %768 = vset.pattern.permute.xlu0 0
          %769 = vperm.xlu0 %768, %v758
          %v770 = vpop.permute.xlu0 %769
          %v772 = vmul.f32 %v760, %v765
          %v773 = vmul.f32 %v761, %v770
          %776 = vrot.lane.b32.xlu0 %v772, 8
          %v777 = vpop.permute.xlu0 %776
          %778 = vrot.lane.b32.xlu0 %v773, 8
          %v779 = vpop.permute.xlu0 %778
          %782 = vst.msk [vmem:[#allocation13] sm:$0xff] %vm357, %v777
          %783 = vst.msk [vmem:[#allocation13 + $0x8] sm:$0xff] %vm357, %v779
          %v784 = vld [vmem:[#allocation5] sm:$0xff]
          %v785 = vld [vmem:[#allocation5 + $0x8] sm:$0xff]
          %787 = vset.pattern.permute.xlu0 0
          %788 = vperm.xlu0 %787, %v717
          %v789 = vpop.permute.xlu0 %788
          %792 = vset.pattern.permute.xlu0 0
          %793 = vperm.xlu0 %792, %v719
          %v794 = vpop.permute.xlu0 %793
          %v796 = vmul.f32 %v784, %v789
          %v797 = vmul.f32 %v785, %v794
          %798 = vst.msk [vmem:[#allocation14] sm:$0xff] %vm281, %v796
          %799 = vst.msk [vmem:[#allocation14 + $0x8] sm:$0xff] %vm281, %v797
        $region44: #{tpu_custom_call.1} parent=27 // pred_fallthru
          _
        // Predicated region
        $region45: #{tpu_custom_call.1} parent=27 // pred_check
          %p800 = pneg %p105
        $region46: #{tpu_custom_call.1} parent=27 // pred_check_branch
          %802 = sbr.rel (%p800) target = $region48
        $region47: #{tpu_custom_call.1} parent=27 // pred_region
          %s803 = smul.u32 2, %s25
          %s805 = ssub.s32 256, 256
          %806 = vsyncadd [#allocation10], %s805
          %s807 = smul.addr %s803, 128
          %s808 = scalar_lea.hbm %s2, %s807
          %s809 = sshll.u32 [#allocation13], 4
          %s810 = int_to_ptr.vmem [resolvable:$true] %s809
          %815 = dma.vmem_to_hbm [thread:$0]  %s810, 256, %s808, [#allocation10], 128, 128, 8
        $region48: #{tpu_custom_call.1} parent=27 // pred_fallthru
          _
        // Predicated region
        $region49: #{tpu_custom_call.1} parent=27 // pred_check
          %p816 = pneg %p131
        $region50: #{tpu_custom_call.1} parent=27 // pred_check_branch
          %818 = sbr.rel (%p816) target = $region52
        $region51: #{tpu_custom_call.1} parent=27 // pred_region
          %s819 = smul.u32 2, %s25
          %s821 = ssub.s32 256, 256
          %822 = vsyncadd [#allocation15], %s821
          %s823 = smul.addr %s819, 128
          %s824 = scalar_lea.hbm %s3, %s823
          %s825 = sshll.u32 [#allocation14], 4
          %s826 = int_to_ptr.vmem [resolvable:$true] %s825
          %831 = dma.vmem_to_hbm [thread:$0]  %s826, 256, %s824, [#allocation15], 128, 128, 8
        $region52: #{tpu_custom_call.1} parent=27 // pred_fallthru
          _
        // Predicated region
        $region53: #{tpu_custom_call.1} parent=27 // pred_check
          %p832 = pneg %p105
        $region54: #{tpu_custom_call.1} parent=27 // pred_check_branch
          %834 = sbr.rel (%p832) target = $region56
        $region55: #{tpu_custom_call.1} parent=27 // pred_region
          %835 = dma.done [#allocation10], 256
        $region56: #{tpu_custom_call.1} parent=27 // pred_fallthru
          _
        // Predicated region
        $region57: #{tpu_custom_call.1} parent=27 // pred_check
          %p836 = pneg %p131
        $region58: #{tpu_custom_call.1} parent=27 // pred_check_branch
          %838 = sbr.rel (%p836) target = $region60
        $region59: #{tpu_custom_call.1} parent=27 // pred_region
          %839 = dma.done [#allocation15], 256
        $region60: #{tpu_custom_call.1} parent=27 // pred_fallthru
          _
      $region28: #{tpu_custom_call.1} parent=5 // pred_fallthru
        _
      %p840 = scmp.le.s32.totalorder 2, %s16
      // Predicated region
      $region61: #{tpu_custom_call.1} parent=5 // pred_check
        %p841 = pneg %p840
      $region62: #{tpu_custom_call.1} parent=5 // pred_check_branch
        %843 = sbr.rel (%p841) target = $region64
      $region63: #{tpu_custom_call.1} parent=5 // pred_region
        %s844 = ssub.s32 %s16, 2
      $region64: #{tpu_custom_call.1} parent=5 // pred_fallthru
        _
    $region6: #{tpu_custom_call.1} parent=1 // loop_footer
      %s20 = sadd.s32 1, %s16
    $region7: #{tpu_custom_call.1} parent=1 // loop_footer_branch
      %15 = sbr.rel target = $region3
    $region8: #{tpu_custom_call.1} parent=1 // loop_exit
      _
    %845 = vsyncpa [#allocation9], 1
    %s846 = scalar_lea.sflag [#allocation9], 1
    %847 = vsyncpa %s846, 1
    %848 = vsyncpa [#allocation12], 1
    %s849 = scalar_lea.sflag [#allocation12], 1
    %850 = vsyncpa %s849, 1
    %851 = vsyncpa [#allocation10], 1
    %s852 = scalar_lea.sflag [#allocation10], 1
    %853 = vsyncpa %s852, 1
    %854 = vsyncpa [#allocation15], 1

</llo_original>
